<compile_context>
chip_gen: v6e
topology: v6e:2x2x1
jax: 0.10.0
libtpu: 0.0.40
codegen_flags: <defaults>
</compile_context>

<pallas_src>
import functools

import jax
import jax.numpy as jnp
from jax.experimental import pallas as pl
from jax.experimental.pallas import tpu as pltpu


def _packed_emb_lookup_kernel(idx_ref, expand_ref, table_tiled_ref, out_ref,
                              *, n_pos, n_heads):
    """Lane-dense embedding gather, replicated across heads.

    idx_ref         : (block_rows, pack) int32 — `pack` flat rows per physical row
    expand_ref      : (pack, 128)  f32 — expand[g, l] = 1.0 iff l // d_emb == g
    table_tiled_ref : (n_pos, 128) f32 — table_tiled[p, l] = table[p, l % d_emb]
    out_ref         : (n_heads, block_rows, 128) — out[h, m, g*d_emb + d]
                                                     = table[idx[m, g], d]
    """
    idx_f = idx_ref[...].astype(jnp.float32)                     # (bm, pack)
    # Fan each packed index out across its d_emb output lanes with one tiny,
    # exact MXU matmul against a 0/1 matrix (small ints * {0,1}):
    #   lane_idx[m, l] = idx[m, l // d_emb]
    lane_idx = jnp.dot(idx_f, expand_ref[...],
                       preferred_element_type=jnp.float32)       # (bm, 128), exact
    # n_pos is tiny: gather == compare/select chain against lane-tiled table
    # rows (VPU, exact f32, MXU stays free).  Out-of-range indices yield zeros
    # (PyTorch nn.Embedding would raise).
    # TODO(synk): for large n_pos switch to a block-diagonal one-hot matmul.
    ttab = table_tiled_ref[...]                                  # (n_pos, 128)
    acc = jnp.where(lane_idx == 0.0, ttab[0:1, :], 0.0)
    for p in range(1, n_pos):
        acc = jnp.where(lane_idx == float(p), ttab[p:p + 1, :], acc)
    acc = acc.astype(out_ref.dtype)
    # Same gather result for every head replica (repeat() semantics): compute
    # once, store n_heads times.
    for h in range(n_heads):
        out_ref[h] = acc


@functools.partial(jax.jit, static_argnames=("n_heads",))
def learned_position_encoder(src_seq, structure_emb, *, n_heads):
    """JAX/Pallas equivalent of LearnedPositionEncoder.forward.

    src_seq        : (B, N, N) int32
    structure_emb  : (n_pos, d_emb) float32   (nn.Embedding weight)
    returns        : (B, n_heads, N, N, d_emb)
    """
    B, N, _ = src_seq.shape
    n_pos, d_emb = structure_emb.shape
    out_dtype = structure_emb.dtype

    # TODO(synk): only d_emb dividing 128 handled (default config: d_emb = 8).
    assert 128 % d_emb == 0, "d_emb must divide 128"
    pack = 128 // d_emb                  # logical rows per 128-lane physical row
    lane_w = pack * d_emb                # = 128

    M0 = B * N * N                       # flat rows per head replica
    idx_flat = src_seq.reshape(-1).astype(jnp.int32)

    # Pad so every physical row is full and the row count is a multiple of the
    # block size (one tuned tile size, no giant tail block).
    rows0 = pl.cdiv(M0, pack)
    # Output block per grid step is (n_heads, block_rows, 128) f32 — keep it
    # around 4 MiB so the double-buffered pipeline fits default scoped VMEM.
    max_block_rows = max(8, ((4 << 20) // (n_heads * lane_w * 4)) // 8 * 8)
    block_rows = min(max_block_rows, 8 * pl.cdiv(rows0, 8))
    rows0_padded = pl.cdiv(rows0, block_rows) * block_rows
    M0_padded = rows0_padded * pack
    if M0_padded != M0:
        idx_flat = jnp.pad(idx_flat, (0, M0_padded - M0))
    idx_packed = idx_flat.reshape(rows0_padded, pack)

    # Tiny constant tables (KB-scale, resident in VMEM every step).
    lane = jnp.arange(lane_w, dtype=jnp.int32)
    grp = jnp.arange(pack, dtype=jnp.int32)
    expand = (lane[None, :] // d_emb == grp[:, None]).astype(jnp.float32)   # (pack, 128)
    table_tiled = jnp.tile(structure_emb.astype(jnp.float32), (1, pack))    # (n_pos, 128)

    blocks_per_replica = rows0_padded // block_rows
    grid = (blocks_per_replica,)

    kernel = functools.partial(_packed_emb_lookup_kernel,
                               n_pos=n_pos, n_heads=n_heads)

    out_3d = pl.pallas_call(
        kernel,
        out_shape=jax.ShapeDtypeStruct((n_heads, rows0_padded, lane_w), out_dtype),
        grid_spec=pltpu.PrefetchScalarGridSpec(
            num_scalar_prefetch=0,
            grid=grid,
            in_specs=[
                pl.BlockSpec((block_rows, pack), lambda i: (i, 0)),
                pl.BlockSpec((pack, lane_w), lambda i: (0, 0)),
                pl.BlockSpec((n_pos, lane_w), lambda i: (0, 0)),
            ],
            # All n_heads replicas of a row block are written in one grid step.
            out_specs=pl.BlockSpec((n_heads, block_rows, lane_w),
                                   lambda i: (0, i, 0)),
        ),
        compiler_params=pltpu.CompilerParams(
            dimension_semantics=("parallel",),
            vmem_limit_bytes=32 << 20,
        ),
        cost_estimate=pl.CostEstimate(
            flops=2 * rows0_padded * pack * lane_w,               # fan-out matmul
            transcendentals=0,
            bytes_accessed=(n_heads * rows0_padded * lane_w * 4   # output writeback
                            + rows0_padded * pack * 4             # index reads (once)
                            + (pack + n_pos) * lane_w * 4),       # resident tables
        ),
    )(idx_packed, expand, table_tiled)

    # Undo lane packing / padding; reproduce torch's repeat + flat .view exactly.
    out = out_3d.reshape(n_heads, M0_padded, d_emb)
    if M0_padded != M0:
        out = out[:, :M0, :]
    return out.reshape(B, n_heads, N, N, d_emb)


if __name__ == "__main__":
    # Config (mirrors module __init__): emb_dim=32, n_heads=4 → d_emb_dim=8,
    # num_structure_index=7 → n_pos=8.
    emb_dim = 32
    n_heads = 4
    d_emb_dim = emb_dim // n_heads
    num_structure_index = 7
    n_pos = num_structure_index + 1

    B, N = 2, 8

    key = jax.random.PRNGKey(0)
    k_idx, k_emb = jax.random.split(key)

    # Deterministic "parameters": the embedding table (nn.Embedding weight).
    structure_emb = jax.random.normal(k_emb, (n_pos, d_emb_dim), dtype=jnp.float32)

    # Input structure indices (B, N, N) in [0, n_pos).
    src_seq = jax.random.randint(k_idx, (B, N, N), 0, n_pos, dtype=jnp.int32)

    out = learned_position_encoder(src_seq, structure_emb, n_heads=n_heads)
    out = jax.block_until_ready(out)

    # Pure-JAX reference of the exact PyTorch semantics (repeat -> lookup -> view).
    ref = jnp.tile(src_seq, (n_heads, 1, 1))
    ref = structure_emb[ref]
    ref = ref.reshape(B, n_heads, N, N, d_emb_dim)

    assert out.shape == (B, n_heads, N, N, d_emb_dim), out.shape
    assert out.dtype == jnp.float32
    assert jnp.allclose(out, ref), "mismatch vs reference embedding lookup"

    print("KERNEL_OK")
</pallas_src>

<mosaic_0001>
module attributes {stable_mosaic.version = 11 : i64} {
  func.func @_packed_emb_lookup_kernel(%arg0: i32, %arg1: memref<8x16xi32, #tpu.memory_space<vmem>>, %arg2: memref<16x128xf32, #tpu.memory_space<vmem>>, %arg3: memref<8x128xf32, #tpu.memory_space<vmem>>, %arg4: memref<4x8x128xf32, #tpu.memory_space<vmem>>) attributes {dimension_semantics = [#tpu.dimension_semantics<parallel>], iteration_bounds = array<i64: 1>, scalar_prefetch = 0 : i64, scratch_operands = 0 : i64, tpu.core_type = #tpu.core_type<tc>, window_params = [{transform_indices = @transform_0, window_bounds = array<i64: 8, 16>}, {pipeline_mode = #tpu.pipeline_mode<synchronous>, transform_indices = @transform_1, window_bounds = array<i64: 16, 128>}, {pipeline_mode = #tpu.pipeline_mode<synchronous>, transform_indices = @transform_2, window_bounds = array<i64: 8, 128>}, {transform_indices = @transform_3, window_bounds = array<i64: 4, 8, 128>}]} {
    %c0 = arith.constant 0 : index
    %c0_0 = arith.constant 0 : index
    %0 = vector.load %arg1[%c0, %c0_0] : memref<8x16xi32, #tpu.memory_space<vmem>>, vector<8x16xi32>
    %1 = arith.sitofp %0 : vector<8x16xi32> to vector<8x16xf32>
    %c0_1 = arith.constant 0 : index
    %c0_2 = arith.constant 0 : index
    %2 = vector.load %arg2[%c0_1, %c0_2] : memref<16x128xf32, #tpu.memory_space<vmem>>, vector<16x128xf32>
    %cst = arith.constant dense<0.000000e+00> : vector<8x128xf32>
    %3 = tpu.matmul %1, %2, %cst {dimension_numbers = #tpu.dot_dimension_numbers<[1], [0], [0], [1], [0, 0, 1, 1], [], []>} : vector<8x16xf32>, vector<16x128xf32>, vector<8x128xf32> -> vector<8x128xf32>
    %c0_3 = arith.constant 0 : index
    %c0_4 = arith.constant 0 : index
    %4 = vector.load %arg3[%c0_3, %c0_4] : memref<8x128xf32, #tpu.memory_space<vmem>>, vector<8x128xf32>
    %cst_5 = arith.constant 0.000000e+00 : f32
    %5 = vector.broadcast %cst_5 : f32 to vector<8x128xf32>
    %6 = arith.cmpf oeq, %3, %5 : vector<8x128xf32>
    %7 = vector.extract_strided_slice %4 {offsets = [0, 0], sizes = [1, 128], strides = [1, 1]} : vector<8x128xf32> to vector<1x128xf32>
    %cst_6 = arith.constant 0.000000e+00 : f32
    %8 = vector.shape_cast %7 : vector<1x128xf32> to vector<1x128xf32>
    %9 = vector.broadcast %8 : vector<1x128xf32> to vector<8x128xf32>
    %10 = vector.broadcast %cst_6 : f32 to vector<8x128xf32>
    %11 = arith.select %6, %9, %10 : vector<8x128xi1>, vector<8x128xf32>
    %cst_7 = arith.constant 1.000000e+00 : f32
    %12 = vector.broadcast %cst_7 : f32 to vector<8x128xf32>
    %13 = arith.cmpf oeq, %3, %12 : vector<8x128xf32>
    %14 = vector.extract_strided_slice %4 {offsets = [1, 0], sizes = [1, 128], strides = [1, 1]} : vector<8x128xf32> to vector<1x128xf32>
    %15 = vector.shape_cast %14 : vector<1x128xf32> to vector<1x128xf32>
    %16 = vector.broadcast %15 : vector<1x128xf32> to vector<8x128xf32>
    %17 = arith.select %13, %16, %11 : vector<8x128xi1>, vector<8x128xf32>
    %cst_8 = arith.constant 2.000000e+00 : f32
    %18 = vector.broadcast %cst_8 : f32 to vector<8x128xf32>
    %19 = arith.cmpf oeq, %3, %18 : vector<8x128xf32>
    %20 = vector.extract_strided_slice %4 {offsets = [2, 0], sizes = [1, 128], strides = [1, 1]} : vector<8x128xf32> to vector<1x128xf32>
    %21 = vector.shape_cast %20 : vector<1x128xf32> to vector<1x128xf32>
    %22 = vector.broadcast %21 : vector<1x128xf32> to vector<8x128xf32>
    %23 = arith.select %19, %22, %17 : vector<8x128xi1>, vector<8x128xf32>
    %cst_9 = arith.constant 3.000000e+00 : f32
    %24 = vector.broadcast %cst_9 : f32 to vector<8x128xf32>
    %25 = arith.cmpf oeq, %3, %24 : vector<8x128xf32>
    %26 = vector.extract_strided_slice %4 {offsets = [3, 0], sizes = [1, 128], strides = [1, 1]} : vector<8x128xf32> to vector<1x128xf32>
    %27 = vector.shape_cast %26 : vector<1x128xf32> to vector<1x128xf32>
    %28 = vector.broadcast %27 : vector<1x128xf32> to vector<8x128xf32>
    %29 = arith.select %25, %28, %23 : vector<8x128xi1>, vector<8x128xf32>
    %cst_10 = arith.constant 4.000000e+00 : f32
    %30 = vector.broadcast %cst_10 : f32 to vector<8x128xf32>
    %31 = arith.cmpf oeq, %3, %30 : vector<8x128xf32>
    %32 = vector.extract_strided_slice %4 {offsets = [4, 0], sizes = [1, 128], strides = [1, 1]} : vector<8x128xf32> to vector<1x128xf32>
    %33 = vector.shape_cast %32 : vector<1x128xf32> to vector<1x128xf32>
    %34 = vector.broadcast %33 : vector<1x128xf32> to vector<8x128xf32>
    %35 = arith.select %31, %34, %29 : vector<8x128xi1>, vector<8x128xf32>
    %cst_11 = arith.constant 5.000000e+00 : f32
    %36 = vector.broadcast %cst_11 : f32 to vector<8x128xf32>
    %37 = arith.cmpf oeq, %3, %36 : vector<8x128xf32>
    %38 = vector.extract_strided_slice %4 {offsets = [5, 0], sizes = [1, 128], strides = [1, 1]} : vector<8x128xf32> to vector<1x128xf32>
    %39 = vector.shape_cast %38 : vector<1x128xf32> to vector<1x128xf32>
    %40 = vector.broadcast %39 : vector<1x128xf32> to vector<8x128xf32>
    %41 = arith.select %37, %40, %35 : vector<8x128xi1>, vector<8x128xf32>
    %cst_12 = arith.constant 6.000000e+00 : f32
    %42 = vector.broadcast %cst_12 : f32 to vector<8x128xf32>
    %43 = arith.cmpf oeq, %3, %42 : vector<8x128xf32>
    %44 = vector.extract_strided_slice %4 {offsets = [6, 0], sizes = [1, 128], strides = [1, 1]} : vector<8x128xf32> to vector<1x128xf32>
    %45 = vector.shape_cast %44 : vector<1x128xf32> to vector<1x128xf32>
    %46 = vector.broadcast %45 : vector<1x128xf32> to vector<8x128xf32>
    %47 = arith.select %43, %46, %41 : vector<8x128xi1>, vector<8x128xf32>
    %cst_13 = arith.constant 7.000000e+00 : f32
    %48 = vector.broadcast %cst_13 : f32 to vector<8x128xf32>
    %49 = arith.cmpf oeq, %3, %48 : vector<8x128xf32>
    %50 = vector.extract_strided_slice %4 {offsets = [7, 0], sizes = [1, 128], strides = [1, 1]} : vector<8x128xf32> to vector<1x128xf32>
    %51 = vector.shape_cast %50 : vector<1x128xf32> to vector<1x128xf32>
    %52 = vector.broadcast %51 : vector<1x128xf32> to vector<8x128xf32>
    %53 = arith.select %49, %52, %47 : vector<8x128xi1>, vector<8x128xf32>
    %c0_14 = arith.constant 0 : index
    %c0_15 = arith.constant 0 : index
    %c0_16 = arith.constant 0 : index
    %54 = vector.load %arg4[%c0_14, %c0_15, %c0_16] : memref<4x8x128xf32, #tpu.memory_space<vmem>>, vector<1x8x128xf32>
    %55 = vector.shape_cast %54 : vector<1x8x128xf32> to vector<8x128xf32>
    %56 = vector.shape_cast %53 : vector<8x128xf32> to vector<1x8x128xf32>
    tpu.vector_store %arg4[%c0_14, %c0_15, %c0_16], %56 {strides = array<i32>} : memref<4x8x128xf32, #tpu.memory_space<vmem>>, vector<1x8x128xf32>,
    %c1 = arith.constant 1 : index
    %c0_17 = arith.constant 0 : index
    %c0_18 = arith.constant 0 : index
    %57 = vector.load %arg4[%c1, %c0_17, %c0_18] : memref<4x8x128xf32, #tpu.memory_space<vmem>>, vector<1x8x128xf32>
    %58 = vector.shape_cast %57 : vector<1x8x128xf32> to vector<8x128xf32>
    %59 = vector.shape_cast %53 : vector<8x128xf32> to vector<1x8x128xf32>
    tpu.vector_store %arg4[%c1, %c0_17, %c0_18], %59 {strides = array<i32>} : memref<4x8x128xf32, #tpu.memory_space<vmem>>, vector<1x8x128xf32>,
    %c2 = arith.constant 2 : index
    %c0_19 = arith.constant 0 : index
    %c0_20 = arith.constant 0 : index
    %60 = vector.load %arg4[%c2, %c0_19, %c0_20] : memref<4x8x128xf32, #tpu.memory_space<vmem>>, vector<1x8x128xf32>
    %61 = vector.shape_cast %60 : vector<1x8x128xf32> to vector<8x128xf32>
    %62 = vector.shape_cast %53 : vector<8x128xf32> to vector<1x8x128xf32>
    tpu.vector_store %arg4[%c2, %c0_19, %c0_20], %62 {strides = array<i32>} : memref<4x8x128xf32, #tpu.memory_space<vmem>>, vector<1x8x128xf32>,
    %c3 = arith.constant 3 : index
    %c0_21 = arith.constant 0 : index
    %c0_22 = arith.constant 0 : index
    %63 = vector.load %arg4[%c3, %c0_21, %c0_22] : memref<4x8x128xf32, #tpu.memory_space<vmem>>, vector<1x8x128xf32>
    %64 = vector.shape_cast %63 : vector<1x8x128xf32> to vector<8x128xf32>
    %65 = vector.shape_cast %53 : vector<8x128xf32> to vector<1x8x128xf32>
    tpu.vector_store %arg4[%c3, %c0_21, %c0_22], %65 {strides = array<i32>} : memref<4x8x128xf32, #tpu.memory_space<vmem>>, vector<1x8x128xf32>,
    return
  }
  func.func @transform_0(%arg0: i32) -> (i32, i32) {
    %c0_i32 = arith.constant 0 : i32
    %c0_i32_0 = arith.constant 0 : i32
    return %arg0, %c0_i32 : i32, i32
  }
  func.func @transform_1(%arg0: i32) -> (i32, i32) {
    %c0_i32 = arith.constant 0 : i32
    %c0_i32_0 = arith.constant 0 : i32
    %c0_i32_1 = arith.constant 0 : i32
    return %c0_i32, %c0_i32_0 : i32, i32
  }
  func.func @transform_2(%arg0: i32) -> (i32, i32) {
    %c0_i32 = arith.constant 0 : i32
    %c0_i32_0 = arith.constant 0 : i32
    %c0_i32_1 = arith.constant 0 : i32
    return %c0_i32, %c0_i32_0 : i32, i32
  }
  func.func @transform_3(%arg0: i32) -> (i32, i32, i32) {
    %c0_i32 = arith.constant 0 : i32
    %c0_i32_0 = arith.constant 0 : i32
    %c0_i32_1 = arith.constant 0 : i32
    return %c0_i32, %arg0, %c0_i32_0 : i32, i32, i32
  }
}

</mosaic_0001>

<llo_original>
// kernel: tile.9
$region0: #{tile.9}
  %s0 = inlined_call_operand.vmem [shape: f32[8,16,8], index: 0, kind: input, shape index: {}]
  %s1 = inlined_call_operand.vmem [shape: f32[8,128], index: 1, kind: output, shape index: {}]
  %s2 = smov 3
  %v3 = vld [vmem:[%s0] ss:$16 sm:%s2]
  %s4 = smov 12
  %v5 = vld [vmem:[%s0] ss:$16 sm:%s4]
  %vm6 = vcmask 1043458
  %v7 = vsel %vm6, %v5, %v3
  %s8 = smov 48
  %v9 = vld [vmem:[%s0] ss:$16 sm:%s8]
  %vm10 = vcmask 1045508
  %v11 = vsel %vm10, %v9, %v7
  %s12 = smov 192
  %v13 = vld [vmem:[%s0] ss:$16 sm:%s12]
  %vm14 = vcmask 1047558
  %v15 = vsel %vm14, %v13, %v11
  %vm16 = vcmask 64512
  %17 = vst.msk [vmem:[%s1] sm:$0xff] %vm16, %v15
  %s18 = scalar_lea.vmem %s0, 15
  %s19 = smov 3
  %v20 = vld [vmem:[%s18] ss:$16 sm:%s19]
  %s21 = scalar_lea.vmem %s0, 15
  %s22 = smov 12
  %v23 = vld [vmem:[%s21] ss:$16 sm:%s22]
  %vm24 = vcmask 1043458
  %v25 = vsel %vm24, %v23, %v20
  %s26 = scalar_lea.vmem %s0, 15
  %s27 = smov 48
  %v28 = vld [vmem:[%s26] ss:$16 sm:%s27]
  %vm29 = vcmask 1045508
  %v30 = vsel %vm29, %v28, %v25
  %s31 = scalar_lea.vmem %s0, 15
  %s32 = smov 192
  %v33 = vld [vmem:[%s31] ss:$16 sm:%s32]
  %vm34 = vcmask 1047558
  %v35 = vsel %vm34, %v33, %v30
  %36 = vrot.lane.b32.xlu0 %v35, 120
  %v37 = vpop.permute.xlu0 %36
  %vm38 = vcmask 1048512
  %39 = vst.msk [vmem:[%s1] sm:$0xff] %vm38, %v37
  %s40 = scalar_lea.vmem %s0, 14
  %s41 = smov 3
  %v42 = vld [vmem:[%s40] ss:$16 sm:%s41]
  %s43 = scalar_lea.vmem %s0, 14
  %s44 = smov 12
  %v45 = vld [vmem:[%s43] ss:$16 sm:%s44]
  %vm46 = vcmask 1043458
  %v47 = vsel %vm46, %v45, %v42
  %s48 = scalar_lea.vmem %s0, 14
  %s49 = smov 48
  %v50 = vld [vmem:[%s48] ss:$16 sm:%s49]
  %vm51 = vcmask 1045508
  %v52 = vsel %vm51, %v50, %v47
  %s53 = scalar_lea.vmem %s0, 14
  %s54 = smov 192
  %v55 = vld [vmem:[%s53] ss:$16 sm:%s54]
  %vm56 = vcmask 1047558
  %v57 = vsel %vm56, %v55, %v52
  %58 = vrot.lane.b32.xlu0 %v57, 112
  %v59 = vpop.permute.xlu0 %58
  %vm60 = vcmask 982912
  %61 = vst.msk [vmem:[%s1] sm:$0xff] %vm60, %v59
  %s62 = scalar_lea.vmem %s0, 13
  %s63 = smov 3
  %v64 = vld [vmem:[%s62] ss:$16 sm:%s63]
  %s65 = scalar_lea.vmem %s0, 13
  %s66 = smov 12
  %v67 = vld [vmem:[%s65] ss:$16 sm:%s66]
  %vm68 = vcmask 1043458
  %v69 = vsel %vm68, %v67, %v64
  %s70 = scalar_lea.vmem %s0, 13
  %s71 = smov 48
  %v72 = vld [vmem:[%s70] ss:$16 sm:%s71]
  %vm73 = vcmask 1045508
  %v74 = vsel %vm73, %v72, %v69
  %s75 = scalar_lea.vmem %s0, 13
  %s76 = smov 192
  %v77 = vld [vmem:[%s75] ss:$16 sm:%s76]
  %vm78 = vcmask 1047558
  %v79 = vsel %vm78, %v77, %v74
  %80 = vrot.lane.b32.xlu0 %v79, 104
  %v81 = vpop.permute.xlu0 %80
  %vm82 = vcmask 917312
  %83 = vst.msk [vmem:[%s1] sm:$0xff] %vm82, %v81
  %s84 = scalar_lea.vmem %s0, 12
  %s85 = smov 3
  %v86 = vld [vmem:[%s84] ss:$16 sm:%s85]
  %s87 = scalar_lea.vmem %s0, 12
  %s88 = smov 12
  %v89 = vld [vmem:[%s87] ss:$16 sm:%s88]
  %vm90 = vcmask 1043458
  %v91 = vsel %vm90, %v89, %v86
  %s92 = scalar_lea.vmem %s0, 12
  %s93 = smov 48
  %v94 = vld [vmem:[%s92] ss:$16 sm:%s93]
  %vm95 = vcmask 1045508
  %v96 = vsel %vm95, %v94, %v91
  %s97 = scalar_lea.vmem %s0, 12
  %s98 = smov 192
  %v99 = vld [vmem:[%s97] ss:$16 sm:%s98]
  %vm100 = vcmask 1047558
  %v101 = vsel %vm100, %v99, %v96
  %102 = vrot.lane.b32.xlu0 %v101, 96
  %v103 = vpop.permute.xlu0 %102
  %vm104 = vcmask 851712
  %105 = vst.msk [vmem:[%s1] sm:$0xff] %vm104, %v103
  %s106 = scalar_lea.vmem %s0, 11
  %s107 = smov 3
  %v108 = vld [vmem:[%s106] ss:$16 sm:%s107]
  %s109 = scalar_lea.vmem %s0, 11
  %s110 = smov 12
  %v111 = vld [vmem:[%s109] ss:$16 sm:%s110]
  %vm112 = vcmask 1043458
  %v113 = vsel %vm112, %v111, %v108
  %s114 = scalar_lea.vmem %s0, 11
  %s115 = smov 48
  %v116 = vld [vmem:[%s114] ss:$16 sm:%s115]
  %vm117 = vcmask 1045508
  %v118 = vsel %vm117, %v116, %v113
  %s119 = scalar_lea.vmem %s0, 11
  %s120 = smov 192
  %v121 = vld [vmem:[%s119] ss:$16 sm:%s120]
  %vm122 = vcmask 1047558
  %v123 = vsel %vm122, %v121, %v118
  %124 = vrot.lane.b32.xlu0 %v123, 88
  %v125 = vpop.permute.xlu0 %124
  %vm126 = vcmask 786112
  %127 = vst.msk [vmem:[%s1] sm:$0xff] %vm126, %v125
  %s128 = scalar_lea.vmem %s0, 10
  %s129 = smov 3
  %v130 = vld [vmem:[%s128] ss:$16 sm:%s129]
  %s131 = scalar_lea.vmem %s0, 10
  %s132 = smov 12
  %v133 = vld [vmem:[%s131] ss:$16 sm:%s132]
  %vm134 = vcmask 1043458
  %v135 = vsel %vm134, %v133, %v130
  %s136 = scalar_lea.vmem %s0, 10
  %s137 = smov 48
  %v138 = vld [vmem:[%s136] ss:$16 sm:%s137]
  %vm139 = vcmask 1045508
  %v140 = vsel %vm139, %v138, %v135
  %s141 = scalar_lea.vmem %s0, 10
  %s142 = smov 192
  %v143 = vld [vmem:[%s141] ss:$16 sm:%s142]
  %vm144 = vcmask 1047558
  %v145 = vsel %vm144, %v143, %v140
  %146 = vrot.lane.b32.xlu0 %v145, 80
  %v147 = vpop.permute.xlu0 %146
  %vm148 = vcmask 720512
  %149 = vst.msk [vmem:[%s1] sm:$0xff] %vm148, %v147
  %s150 = scalar_lea.vmem %s0, 9
  %s151 = smov 3
  %v152 = vld [vmem:[%s150] ss:$16 sm:%s151]
  %s153 = scalar_lea.vmem %s0, 9
  %s154 = smov 12
  %v155 = vld [vmem:[%s153] ss:$16 sm:%s154]
  %vm156 = vcmask 1043458
  %v157 = vsel %vm156, %v155, %v152
  %s158 = scalar_lea.vmem %s0, 9
  %s159 = smov 48
  %v160 = vld [vmem:[%s158] ss:$16 sm:%s159]
  %vm161 = vcmask 1045508
  %v162 = vsel %vm161, %v160, %v157
  %s163 = scalar_lea.vmem %s0, 9
  %s164 = smov 192
  %v165 = vld [vmem:[%s163] ss:$16 sm:%s164]
  %vm166 = vcmask 1047558
  %v167 = vsel %vm166, %v165, %v162
  %168 = vrot.lane.b32.xlu0 %v167, 72
  %v169 = vpop.permute.xlu0 %168
  %vm170 = vcmask 654912
  %171 = vst.msk [vmem:[%s1] sm:$0xff] %vm170, %v169
  %s172 = scalar_lea.vmem %s0, 8
  %s173 = smov 3
  %v174 = vld [vmem:[%s172] ss:$16 sm:%s173]
  %s175 = scalar_lea.vmem %s0, 8
  %s176 = smov 12
  %v177 = vld [vmem:[%s175] ss:$16 sm:%s176]
  %vm178 = vcmask 1043458
  %v179 = vsel %vm178, %v177, %v174
  %s180 = scalar_lea.vmem %s0, 8
  %s181 = smov 48
  %v182 = vld [vmem:[%s180] ss:$16 sm:%s181]
  %vm183 = vcmask 1045508
  %v184 = vsel %vm183, %v182, %v179
  %s185 = scalar_lea.vmem %s0, 8
  %s186 = smov 192
  %v187 = vld [vmem:[%s185] ss:$16 sm:%s186]
  %vm188 = vcmask 1047558
  %v189 = vsel %vm188, %v187, %v184
  %190 = vrot.lane.b32.xlu0 %v189, 64
  %v191 = vpop.permute.xlu0 %190
  %vm192 = vcmask 589312
  %193 = vst.msk [vmem:[%s1] sm:$0xff] %vm192, %v191
  %s194 = scalar_lea.vmem %s0, 7
  %s195 = smov 3
  %v196 = vld [vmem:[%s194] ss:$16 sm:%s195]
  %s197 = scalar_lea.vmem %s0, 7
  %s198 = smov 12
  %v199 = vld [vmem:[%s197] ss:$16 sm:%s198]
  %vm200 = vcmask 1043458
  %v201 = vsel %vm200, %v199, %v196
  %s202 = scalar_lea.vmem %s0, 7
  %s203 = smov 48
  %v204 = vld [vmem:[%s202] ss:$16 sm:%s203]
  %vm205 = vcmask 1045508
  %v206 = vsel %vm205, %v204, %v201
  %s207 = scalar_lea.vmem %s0, 7
  %s208 = smov 192
  %v209 = vld [vmem:[%s207] ss:$16 sm:%s208]
  %vm210 = vcmask 1047558
  %v211 = vsel %vm210, %v209, %v206
  %212 = vrot.lane.b32.xlu0 %v211, 56
  %v213 = vpop.permute.xlu0 %212
  %vm214 = vcmask 523712
  %215 = vst.msk [vmem:[%s1] sm:$0xff] %vm214, %v213
  %s216 = scalar_lea.vmem %s0, 6
  %s217 = smov 3
  %v218 = vld [vmem:[%s216] ss:$16 sm:%s217]
  %s219 = scalar_lea.vmem %s0, 6
  %s220 = smov 12
  %v221 = vld [vmem:[%s219] ss:$16 sm:%s220]
  %vm222 = vcmask 1043458
  %v223 = vsel %vm222, %v221, %v218
  %s224 = scalar_lea.vmem %s0, 6
  %s225 = smov 48
  %v226 = vld [vmem:[%s224] ss:$16 sm:%s225]
  %vm227 = vcmask 1045508
  %v228 = vsel %vm227, %v226, %v223
  %s229 = scalar_lea.vmem %s0, 6
  %s230 = smov 192
  %v231 = vld [vmem:[%s229] ss:$16 sm:%s230]
  %vm232 = vcmask 1047558
  %v233 = vsel %vm232, %v231, %v228
  %234 = vrot.lane.b32.xlu0 %v233, 48
  %v235 = vpop.permute.xlu0 %234
  %vm236 = vcmask 458112
  %237 = vst.msk [vmem:[%s1] sm:$0xff] %vm236, %v235
  %s238 = scalar_lea.vmem %s0, 5
  %s239 = smov 3
  %v240 = vld [vmem:[%s238] ss:$16 sm:%s239]
  %s241 = scalar_lea.vmem %s0, 5
  %s242 = smov 12
  %v243 = vld [vmem:[%s241] ss:$16 sm:%s242]
  %vm244 = vcmask 1043458
  %v245 = vsel %vm244, %v243, %v240
  %s246 = scalar_lea.vmem %s0, 5
  %s247 = smov 48
  %v248 = vld [vmem:[%s246] ss:$16 sm:%s247]
  %vm249 = vcmask 1045508
  %v250 = vsel %vm249, %v248, %v245
  %s251 = scalar_lea.vmem %s0, 5
  %s252 = smov 192
  %v253 = vld [vmem:[%s251] ss:$16 sm:%s252]
  %vm254 = vcmask 1047558
  %v255 = vsel %vm254, %v253, %v250
  %256 = vrot.lane.b32.xlu0 %v255, 40
  %v257 = vpop.permute.xlu0 %256
  %vm258 = vcmask 392512
  %259 = vst.msk [vmem:[%s1] sm:$0xff] %vm258, %v257
  %s260 = scalar_lea.vmem %s0, 4
  %s261 = smov 3
  %v262 = vld [vmem:[%s260] ss:$16 sm:%s261]
  %s263 = scalar_lea.vmem %s0, 4
  %s264 = smov 12
  %v265 = vld [vmem:[%s263] ss:$16 sm:%s264]
  %vm266 = vcmask 1043458
  %v267 = vsel %vm266, %v265, %v262
  %s268 = scalar_lea.vmem %s0, 4
  %s269 = smov 48
  %v270 = vld [vmem:[%s268] ss:$16 sm:%s269]
  %vm271 = vcmask 1045508
  %v272 = vsel %vm271, %v270, %v267
  %s273 = scalar_lea.vmem %s0, 4
  %s274 = smov 192
  %v275 = vld [vmem:[%s273] ss:$16 sm:%s274]
  %vm276 = vcmask 1047558
  %v277 = vsel %vm276, %v275, %v272
  %278 = vrot.lane.b32.xlu0 %v277, 32
  %v279 = vpop.permute.xlu0 %278
  %vm280 = vcmask 326912
  %281 = vst.msk [vmem:[%s1] sm:$0xff] %vm280, %v279
  %s282 = scalar_lea.vmem %s0, 3
  %s283 = smov 3
  %v284 = vld [vmem:[%s282] ss:$16 sm:%s283]
  %s285 = scalar_lea.vmem %s0, 3
  %s286 = smov 12
  %v287 = vld [vmem:[%s285] ss:$16 sm:%s286]
  %vm288 = vcmask 1043458
  %v289 = vsel %vm288, %v287, %v284
  %s290 = scalar_lea.vmem %s0, 3
  %s291 = smov 48
  %v292 = vld [vmem:[%s290] ss:$16 sm:%s291]
  %vm293 = vcmask 1045508
  %v294 = vsel %vm293, %v292, %v289
  %s295 = scalar_lea.vmem %s0, 3
  %s296 = smov 192
  %v297 = vld [vmem:[%s295] ss:$16 sm:%s296]
  %vm298 = vcmask 1047558
  %v299 = vsel %vm298, %v297, %v294
  %300 = vrot.lane.b32.xlu0 %v299, 24
  %v301 = vpop.permute.xlu0 %300
  %vm302 = vcmask 261312
  %303 = vst.msk [vmem:[%s1] sm:$0xff] %vm302, %v301
  %s304 = scalar_lea.vmem %s0, 2
  %s305 = smov 3
  %v306 = vld [vmem:[%s304] ss:$16 sm:%s305]
  %s307 = scalar_lea.vmem %s0, 2
  %s308 = smov 12
  %v309 = vld [vmem:[%s307] ss:$16 sm:%s308]
  %vm310 = vcmask 1043458
  %v311 = vsel %vm310, %v309, %v306
  %s312 = scalar_lea.vmem %s0, 2
  %s313 = smov 48
  %v314 = vld [vmem:[%s312] ss:$16 sm:%s313]
  %vm315 = vcmask 1045508
  %v316 = vsel %vm315, %v314, %v311
  %s317 = scalar_lea.vmem %s0, 2
  %s318 = smov 192
  %v319 = vld [vmem:[%s317] ss:$16 sm:%s318]
  %vm320 = vcmask 1047558
  %v321 = vsel %vm320, %v319, %v316
  %322 = vrot.lane.b32.xlu0 %v321, 16
  %v323 = vpop.permute.xlu0 %322
  %vm324 = vcmask 195712
  %325 = vst.msk [vmem:[%s1] sm:$0xff] %vm324, %v323
  %s326 = scalar_lea.vmem %s0, 1
  %s327 = smov 3
  %v328 = vld [vmem:[%s326] ss:$16 sm:%s327]
  %s329 = scalar_lea.vmem %s0, 1
  %s330 = smov 12
  %v331 = vld [vmem:[%s329] ss:$16 sm:%s330]
  %vm332 = vcmask 1043458
  %v333 = vsel %vm332, %v331, %v328
  %s334 = scalar_lea.vmem %s0, 1
  %s335 = smov 48
  %v336 = vld [vmem:[%s334] ss:$16 sm:%s335]
  %vm337 = vcmask 1045508
  %v338 = vsel %vm337, %v336, %v333
  %s339 = scalar_lea.vmem %s0, 1
  %s340 = smov 192
  %v341 = vld [vmem:[%s339] ss:$16 sm:%s340]
  %vm342 = vcmask 1047558
  %v343 = vsel %vm342, %v341, %v338
  %344 = vrot.lane.b32.xlu0 %v343, 8
  %v345 = vpop.permute.xlu0 %344
  %vm346 = vcmask 130112
  %347 = vst.msk [vmem:[%s1] sm:$0xff] %vm346, %v345

// kernel: learned_position_encoder.1
$region0: #{learned_position_encoder.1}
  #allocation0 [shape = 'u32[]', space=smem, size = 0x4, offset = 0x4, fixed_abs, tag = 'smem constant byte address 0x4 - core index']
  #allocation1 [shape = 'u32[144,128]{1,0:T(1,128)}', space=vmem, size = 0x12000, scoped, tag = 'internal scratch']
  %s0 = inlined_call_operand.vmem [shape: s32[8,16], index: 0, kind: input, shape index: {}]
  %s1 = inlined_call_operand.vmem [shape: f32[16,128], index: 1, kind: input, shape index: {}]
  %s2 = inlined_call_operand.vmem [shape: f32[8,128], index: 2, kind: input, shape index: {}]
  %s3 = inlined_call_operand.vmem [shape: f32[4,8,128], index: 3, kind: output, shape index: {}]
  %s4 = sld [smem:[#allocation0]]
  $region22: #{learned_position_encoder.1} parent=0
    _
  %s6 = ssub.s32 1, %s4
  %s7 = scalar_select 0, %s6, %s4
  // Predicated region
  $region2: #{learned_position_encoder.1} parent=0 // pred_check
    _
  $region3: #{learned_position_encoder.1} parent=0 // pred_check_branch
    %9 = sbr.rel (0) target = $region5
  $region4: #{learned_position_encoder.1} parent=0 // pred_region
    _
  $region5: #{learned_position_encoder.1} parent=0 // pred_fallthru
    _
  // Predicated region
  $region6: #{learned_position_encoder.1} parent=0 // pred_check
    _
  $region7: #{learned_position_encoder.1} parent=0 // pred_check_branch
    %11 = sbr.rel (0) target = $region9
  $region8: #{learned_position_encoder.1} parent=0 // pred_region
    _
  $region9: #{learned_position_encoder.1} parent=0 // pred_fallthru
    _
  // Predicated region
  $region10: #{learned_position_encoder.1} parent=0 // pred_check
    _
  $region11: #{learned_position_encoder.1} parent=0 // pred_check_branch
    %13 = sbr.rel (0) target = $region13
  $region12: #{learned_position_encoder.1} parent=0 // pred_region
    _
  $region13: #{learned_position_encoder.1} parent=0 // pred_fallthru
    _
  %v14 = vld [vmem:[%s0] sm:$0xff]
  %v15 = vcvt.s32.f32 %v14
  %v16 = vld [vmem:[%s1] sm:$0xff]
  %v17 = vld [vmem:[%s1 + $0x8] sm:$0xff]
  %vm18 = vcmask 130048
  %v20 = vsel %vm18, %v15, 0
  %22 = vmatprep.subr.mxu0 0.0
  %23 = vmatpush1.msra.mxu0 0.0
  %24 = vmatprep.subr.mxu0 0.0
  %25 = vmatpush1.msra.mxu0 0.0
  %26 = vmatprep.subr.mxu0 0.0
  %27 = vmatpush1.msra.mxu0 0.0
  %28 = vmatprep.subr.mxu0 0.0
  %29 = vmatpush1.msra.mxu0 0.0
  %30 = vmatprep.subr.mxu0 0.0
  %31 = vmatpush1.msra.mxu0 0.0
  %32 = vmatprep.subr.mxu0 0.0
  %33 = vmatpush1.msra.mxu0 0.0
  %34 = vmatprep.subr.mxu0 0.0
  %35 = vmatpush1.msra.mxu0 0.0
  %36 = vmatprep.subr.mxu0 0.0
  %37 = vmatpush1.msra.mxu0 0.0
  %38 = vmatprep.subr.mxu0 0.0
  %39 = vmatpush1.msra.mxu0 0.0
  %40 = vmatprep.subr.mxu0 0.0
  %41 = vmatpush1.msra.mxu0 0.0
  %42 = vmatprep.subr.mxu0 0.0
  %43 = vmatpush1.msra.mxu0 0.0
  %44 = vmatprep.subr.mxu0 0.0
  %45 = vmatpush1.msra.mxu0 0.0
  %46 = vmatprep.subr.mxu0 0.0
  %47 = vmatpush1.msra.mxu0 0.0
  %48 = vmatprep.subr.mxu0 0.0
  %49 = vmatpush1.msra.mxu0 0.0
  %50 = vmatprep.subr.mxu0 0.0
  %51 = vmatpush1.msra.mxu0 %v17
  %52 = vmatprep.subr.mxu0 0.0
  %53 = vmatpush1.msra.mxu0 %v16
  %54 = vmatprep.subr.mxu0 0.0
  %55 = vmatpush2.msra.mxu0 0.0
  %56 = vmatprep.subr.mxu0 0.0
  %57 = vmatpush2.msra.mxu0 0.0
  %58 = vmatprep.subr.mxu0 0.0
  %59 = vmatpush2.msra.mxu0 0.0
  %60 = vmatprep.subr.mxu0 0.0
  %61 = vmatpush2.msra.mxu0 0.0
  %62 = vmatprep.subr.mxu0 0.0
  %63 = vmatpush2.msra.mxu0 0.0
  %64 = vmatprep.subr.mxu0 0.0
  %65 = vmatpush2.msra.mxu0 0.0
  %66 = vmatprep.subr.mxu0 0.0
  %67 = vmatpush2.msra.mxu0 0.0
  %68 = vmatprep.subr.mxu0 0.0
  %69 = vmatpush2.msra.mxu0 0.0
  %70 = vmatprep.subr.mxu0 0.0
  %71 = vmatpush2.msra.mxu0 0.0
  %72 = vmatprep.subr.mxu0 0.0
  %73 = vmatpush2.msra.mxu0 0.0
  %74 = vmatprep.subr.mxu0 0.0
  %75 = vmatpush2.msra.mxu0 0.0
  %76 = vmatprep.subr.mxu0 0.0
  %77 = vmatpush2.msra.mxu0 0.0
  %78 = vmatprep.subr.mxu0 0.0
  %79 = vmatpush2.msra.mxu0 0.0
  %80 = vmatprep.subr.mxu0 0.0
  %81 = vmatpush2.msra.mxu0 0.0
  %82 = vmatprep.subr.mxu0 0.0
  %83 = vmatpush2.msra.mxu0 0.0
  %84 = vmatprep.subr.mxu0 0.0
  %85 = vmatpush2.msra.mxu0 0.0
  %86 = vmatprep.mubr.f32.mxu0 0.0
  %87 = vmatmul.mubr.f32.gmra.mxu0 %v20
  %v88 = vpop.f32.mrf.mxu0
  %v89 = vadd.f32 0.0, %v88
  %v90 = vpop.f32.mrf.mxu0
  %91 = vdwg.mxu0
  %v92 = vld [vmem:[%s2] sm:$0xff]
  %vm93 = vcmp.eq.f32.partialorder %v89, 0.0
  %v94 = vlaneseq
  %v95 = vshrl.u32 %v94, 7
  %v96 = vsub.s32 0, %v95
  %v97 = vrot.slane %v92, %v96
  %v98 = vsel %vm93, %v97, 0.0
  %vm99 = vcmp.eq.f32.partialorder %v89, 1.0
  %v100 = vlaneseq
  %v101 = vshrl.u32 %v100, 7
  %v102 = vsub.s32 1, %v101
  %v103 = vrot.slane %v92, %v102
  %v104 = vsel %vm99, %v103, %v98
  %vm105 = vcmp.eq.f32.partialorder %v89, 2.0
  %v106 = vlaneseq
  %v107 = vshrl.u32 %v106, 7
  %v108 = vsub.s32 2, %v107
  %v109 = vrot.slane %v92, %v108
  %v110 = vsel %vm105, %v109, %v104
  %vm111 = vcmp.eq.f32.partialorder %v89, 3.0
  %v112 = vlaneseq
  %v113 = vshrl.u32 %v112, 7
  %v114 = vsub.s32 3, %v113
  %v115 = vrot.slane %v92, %v114
  %v116 = vsel %vm111, %v115, %v110
  %vm117 = vcmp.eq.f32.partialorder %v89, 4.0
  %v118 = vlaneseq
  %v119 = vshrl.u32 %v118, 7
  %v120 = vsub.s32 4, %v119
  %v121 = vrot.slane %v92, %v120
  %v122 = vsel %vm117, %v121, %v116
  %vm123 = vcmp.eq.f32.partialorder %v89, 5.0
  %v124 = vlaneseq
  %v125 = vshrl.u32 %v124, 7
  %v126 = vsub.s32 5, %v125
  %v127 = vrot.slane %v92, %v126
  %v128 = vsel %vm123, %v127, %v122
  %vm129 = vcmp.eq.f32.partialorder %v89, 6.0
  %v130 = vlaneseq
  %v131 = vshrl.u32 %v130, 7
  %v132 = vsub.s32 6, %v131
  %v133 = vrot.slane %v92, %v132
  %v134 = vsel %vm129, %v133, %v128
  %vm135 = vcmp.eq.f32.partialorder %v89, 7.0
  %v136 = vlaneseq
  %v137 = vshrl.u32 %v136, 7
  %v138 = vsub.s32 7, %v137
  %v139 = vrot.slane %v92, %v138
  %v140 = vsel %vm135, %v139, %v134
  %141 = vst [vmem:[%s3] sm:$0xff] %v140
  %s142 = scalar_lea.vmem %s3, 8
  %143 = vst [vmem:[%s142] sm:$0xff] %v140
  %s144 = scalar_lea.vmem %s3, 16
  %145 = vst [vmem:[%s144] sm:$0xff] %v140
  %s146 = scalar_lea.vmem %s3, 24
  %147 = vst [vmem:[%s146] sm:$0xff] %v140
  // Predicated region
  $region14: #{learned_position_encoder.1} parent=0 // pred_check
    _
  $region15: #{learned_position_encoder.1} parent=0 // pred_check_branch
    %149 = sbr.rel (0) target = $region17
  $region16: #{learned_position_encoder.1} parent=0 // pred_region
    _
  $region17: #{learned_position_encoder.1} parent=0 // pred_fallthru
    _
  // Predicated region
  $region18: #{learned_position_encoder.1} parent=0 // pred_check
    _
  $region19: #{learned_position_encoder.1} parent=0 // pred_check_branch
    %151 = sbr.rel (0) target = $region21
  $region20: #{learned_position_encoder.1} parent=0 // pred_region
    _
  $region21: #{learned_position_encoder.1} parent=0 // pred_fallthru
    _

</llo_original>
